<compile_context>
chip_gen: v5e
topology: v5e:2x2
jax: 0.10.0
libtpu: 0.0.40
codegen_flags: <defaults>
</compile_context>

<pallas_src>
import functools

import jax
import jax.numpy as jnp
from jax.experimental import pallas as pl
from jax.experimental.pallas import tpu as pltpu

ACTION_DIM = 7
HIDDEN = 128
FUSED_HIDDEN = 2 * HIDDEN     # 256: action hidden ++ termination hidden
OUT_W = 128                   # lane-dense output width (cols 0..6 act, 7 term)
TB_MAX = 512                  # batch tile: sized so v7x (64 MiB VMEM) is safe


def _round_up(x, m):
    return ((x + m - 1) // m) * m


def _oc_fused_kernel(x_ref, w1_ref, b1_ref, w2_ref, b2_ref, out_ref):
    x = x_ref[...]                                                # (TB, D) f32

    # Fused first layer: both heads' hidden layers in one 256-wide matmul.
    h = jnp.dot(x, w1_ref[...], preferred_element_type=jnp.float32) + b1_ref[...]
    h = jnp.maximum(h, 0.0)                                       # (TB, 256)

    # Fused second layer: block-diagonal (256, 128) -> (TB, 128) logits.
    logits = jnp.dot(h, w2_ref[...], preferred_element_type=jnp.float32) + b2_ref[...]

    # Column 7 gets sigmoid, columns 0..6 get tanh; cols 8..127 are padding.
    # sigmoid(z) = 0.5 * (tanh(0.5*z) + 1)  -> single tanh on the EUP.
    col = jax.lax.broadcasted_iota(jnp.int32, logits.shape, 1)
    is_term = col == ACTION_DIM
    z = jnp.where(is_term, 0.5 * logits, logits)
    t = jnp.tanh(z)
    out_ref[...] = jnp.where(is_term, 0.5 * (t + 1.0), t)


@functools.partial(jax.jit, static_argnames=())
def option_critic_forward(x, packed):
    """x: (B, input_dim) f32.  packed: dict from pack_params()."""
    B, D = x.shape
    w1, b1, w2, b2 = packed["w1"], packed["b1"], packed["w2"], packed["b2"]

    # Pad batch to a multiple of 8 sublanes; tile it for large B.
    tb = min(TB_MAX, _round_up(max(B, 1), 8))
    b_pad = _round_up(B, tb)
    x_p = jnp.pad(x, ((0, b_pad - B), (0, 0))) if b_pad != B else x
    grid = (b_pad // tb,)

    out = pl.pallas_call(
        _oc_fused_kernel,
        out_shape=jax.ShapeDtypeStruct((b_pad, OUT_W), jnp.float32),
        grid_spec=pltpu.PrefetchScalarGridSpec(
            num_scalar_prefetch=0,
            grid=grid,
            in_specs=[
                pl.BlockSpec((tb, D), lambda i: (i, 0)),              # x tile
                pl.BlockSpec((D, FUSED_HIDDEN), lambda i: (0, 0)),    # W1 resident
                pl.BlockSpec((1, FUSED_HIDDEN), lambda i: (0, 0)),    # b1 resident
                pl.BlockSpec((FUSED_HIDDEN, OUT_W), lambda i: (0, 0)),  # W2 resident
                pl.BlockSpec((1, OUT_W), lambda i: (0, 0)),           # b2 resident
            ],
            out_specs=pl.BlockSpec((tb, OUT_W), lambda i: (i, 0)),
        ),
        compiler_params=pltpu.CompilerParams(
            dimension_semantics=("parallel",),   # shard batch over v7x's 2 TCs
        ),
        cost_estimate=pl.CostEstimate(
            flops=2 * b_pad * (D * FUSED_HIDDEN + FUSED_HIDDEN * OUT_W),
            transcendentals=b_pad * OUT_W,
            bytes_accessed=4 * (b_pad * D
                                + D * FUSED_HIDDEN + FUSED_HIDDEN
                                + FUSED_HIDDEN * OUT_W + OUT_W
                                + b_pad * OUT_W),
        ),
    )(x_p, w1, b1, w2, b2)

    action = out[:B, :ACTION_DIM]                    # (B, 7)
    termination_prob = out[:B, ACTION_DIM:ACTION_DIM + 1]  # (B, 1)
    return action, termination_prob


def init_params(key, input_dim):
    """Deterministic synthetic init (uniform, roughly PyTorch Linear scale)."""
    ks = jax.random.split(key, 8)

    def lin(kw, kb, fan_in, fan_out):
        bound = 1.0 / jnp.sqrt(jnp.float32(fan_in))
        w = jax.random.uniform(kw, (fan_in, fan_out), jnp.float32, -bound, bound)
        b = jax.random.uniform(kb, (1, fan_out), jnp.float32, -bound, bound)
        return w, b

    w1a, b1a = lin(ks[0], ks[1], input_dim, HIDDEN)
    w2a, b2a = lin(ks[2], ks[3], HIDDEN, ACTION_DIM)
    w1t, b1t = lin(ks[4], ks[5], input_dim, HIDDEN)
    w2t, b2t = lin(ks[6], ks[7], HIDDEN, 1)
    return dict(w1a=w1a, b1a=b1a, w2a=w2a, b2a=b2a,
                w1t=w1t, b1t=b1t, w2t=w2t, b2t=b2t)


def pack_params(p):
    """Pack the two heads into the fused kernel layout (done once, offline)."""
    w1 = jnp.concatenate([p["w1a"], p["w1t"]], axis=1)            # (D, 256)
    b1 = jnp.concatenate([p["b1a"], p["b1t"]], axis=1)            # (1, 256)
    w2 = jnp.zeros((FUSED_HIDDEN, OUT_W), jnp.float32)            # block-diagonal
    w2 = w2.at[:HIDDEN, :ACTION_DIM].set(p["w2a"])
    w2 = w2.at[HIDDEN:, ACTION_DIM].set(p["w2t"][:, 0])
    b2 = jnp.zeros((1, OUT_W), jnp.float32)
    b2 = b2.at[0, :ACTION_DIM].set(p["b2a"][0])
    b2 = b2.at[0, ACTION_DIM].set(p["b2t"][0, 0])
    return dict(w1=w1, b1=b1, w2=w2, b2=b2)


def _reference(x, p):
    h_a = jnp.maximum(x @ p["w1a"] + p["b1a"], 0.0)
    act = jnp.tanh(h_a @ p["w2a"] + p["b2a"])
    h_t = jnp.maximum(x @ p["w1t"] + p["b1t"], 0.0)
    term = jax.nn.sigmoid(h_t @ p["w2t"] + p["b2t"])
    return act, term


if __name__ == "__main__":
    key = jax.random.PRNGKey(0)
    k_x, k_p = jax.random.split(key)

    batch, input_dim = 2, 32
    x = jax.random.normal(k_x, (batch, input_dim), jnp.float32)
    params = init_params(k_p, input_dim)
    packed = pack_params(params)

    action, termination_prob = option_critic_forward(x, packed)
    jax.block_until_ready((action, termination_prob))

    ref_action, ref_term = _reference(x, params)
    assert action.shape == (batch, ACTION_DIM)
    assert termination_prob.shape == (batch, 1)
    assert jnp.allclose(action, ref_action, atol=1e-5)
    assert jnp.allclose(termination_prob, ref_term, atol=1e-5)

    print("KERNEL_OK")
</pallas_src>

<mosaic_0001>
module attributes {stable_mosaic.version = 11 : i64} {
  func.func @_oc_fused_kernel(%arg0: i32, %arg1: memref<8x32xf32, #tpu.memory_space<vmem>>, %arg2: memref<32x256xf32, #tpu.memory_space<vmem>>, %arg3: memref<1x256xf32, #tpu.memory_space<vmem>>, %arg4: memref<256x128xf32, #tpu.memory_space<vmem>>, %arg5: memref<1x128xf32, #tpu.memory_space<vmem>>, %arg6: memref<8x128xf32, #tpu.memory_space<vmem>>) attributes {dimension_semantics = [#tpu.dimension_semantics<parallel>], iteration_bounds = array<i64: 1>, scalar_prefetch = 0 : i64, scratch_operands = 0 : i64, tpu.core_type = #tpu.core_type<tc>, window_params = [{transform_indices = @transform_0, window_bounds = array<i64: 8, 32>}, {pipeline_mode = #tpu.pipeline_mode<synchronous>, transform_indices = @transform_1, window_bounds = array<i64: 32, 256>}, {pipeline_mode = #tpu.pipeline_mode<synchronous>, transform_indices = @transform_2, window_bounds = array<i64: 1, 256>}, {pipeline_mode = #tpu.pipeline_mode<synchronous>, transform_indices = @transform_3, window_bounds = array<i64: 256, 128>}, {pipeline_mode = #tpu.pipeline_mode<synchronous>, transform_indices = @transform_4, window_bounds = array<i64: 1, 128>}, {transform_indices = @transform_5, window_bounds = array<i64: 8, 128>}]} {
    %c0 = arith.constant 0 : index
    %c0_0 = arith.constant 0 : index
    %0 = vector.load %arg1[%c0, %c0_0] : memref<8x32xf32, #tpu.memory_space<vmem>>, vector<8x32xf32>
    %c0_1 = arith.constant 0 : index
    %c0_2 = arith.constant 0 : index
    %1 = vector.load %arg2[%c0_1, %c0_2] : memref<32x256xf32, #tpu.memory_space<vmem>>, vector<32x256xf32>
    %cst = arith.constant dense<0.000000e+00> : vector<8x256xf32>
    %2 = tpu.matmul %0, %1, %cst {dimension_numbers = #tpu.dot_dimension_numbers<[1], [0], [0], [1], [0, 0, 1, 1], [], []>} : vector<8x32xf32>, vector<32x256xf32>, vector<8x256xf32> -> vector<8x256xf32>
    %c0_3 = arith.constant 0 : index
    %c0_4 = arith.constant 0 : index
    %3 = vector.load %arg3[%c0_3, %c0_4] : memref<1x256xf32, #tpu.memory_space<vmem>>, vector<1x256xf32>
    %4 = vector.broadcast %3 : vector<1x256xf32> to vector<8x256xf32>
    %5 = arith.addf %2, %4 : vector<8x256xf32>
    %cst_5 = arith.constant 0.000000e+00 : f32
    %6 = vector.broadcast %cst_5 : f32 to vector<8x256xf32>
    %7 = arith.maximumf %5, %6 : vector<8x256xf32>
    %c0_6 = arith.constant 0 : index
    %c0_7 = arith.constant 0 : index
    %8 = vector.load %arg4[%c0_6, %c0_7] : memref<256x128xf32, #tpu.memory_space<vmem>>, vector<256x128xf32>
    %cst_8 = arith.constant dense<0.000000e+00> : vector<8x128xf32>
    %9 = tpu.matmul %7, %8, %cst_8 {dimension_numbers = #tpu.dot_dimension_numbers<[1], [0], [0], [1], [0, 0, 1, 1], [], []>} : vector<8x256xf32>, vector<256x128xf32>, vector<8x128xf32> -> vector<8x128xf32>
    %c0_9 = arith.constant 0 : index
    %c0_10 = arith.constant 0 : index
    %10 = vector.load %arg5[%c0_9, %c0_10] : memref<1x128xf32, #tpu.memory_space<vmem>>, vector<1x128xf32>
    %11 = vector.broadcast %10 : vector<1x128xf32> to vector<8x128xf32>
    %12 = arith.addf %9, %11 : vector<8x128xf32>
    %13 = tpu.iota {dimensions = array<i32: 1>} : vector<8x128xi32>
    %c7_i32 = arith.constant 7 : i32
    %14 = vector.broadcast %c7_i32 : i32 to vector<8x128xi32>
    %15 = arith.cmpi eq, %13, %14 : vector<8x128xi32>
    %cst_11 = arith.constant 5.000000e-01 : f32
    %16 = vector.broadcast %cst_11 : f32 to vector<8x128xf32>
    %17 = arith.mulf %16, %12 : vector<8x128xf32>
    %18 = arith.select %15, %17, %12 : vector<8x128xi1>, vector<8x128xf32>
    %19 = math.tanh %18 : vector<8x128xf32>
    %cst_12 = arith.constant 1.000000e+00 : f32
    %20 = vector.broadcast %cst_12 : f32 to vector<8x128xf32>
    %21 = arith.addf %19, %20 : vector<8x128xf32>
    %cst_13 = arith.constant 5.000000e-01 : f32
    %22 = vector.broadcast %cst_13 : f32 to vector<8x128xf32>
    %23 = arith.mulf %22, %21 : vector<8x128xf32>
    %24 = arith.select %15, %23, %19 : vector<8x128xi1>, vector<8x128xf32>
    %c0_14 = arith.constant 0 : index
    %c0_15 = arith.constant 0 : index
    %25 = vector.load %arg6[%c0_14, %c0_15] : memref<8x128xf32, #tpu.memory_space<vmem>>, vector<8x128xf32>
    tpu.vector_store %arg6[%c0_14, %c0_15], %24 {strides = array<i32>} : memref<8x128xf32, #tpu.memory_space<vmem>>, vector<8x128xf32>,
    return
  }
  func.func @transform_0(%arg0: i32) -> (i32, i32) {
    %c0_i32 = arith.constant 0 : i32
    %c0_i32_0 = arith.constant 0 : i32
    return %arg0, %c0_i32 : i32, i32
  }
  func.func @transform_1(%arg0: i32) -> (i32, i32) {
    %c0_i32 = arith.constant 0 : i32
    %c0_i32_0 = arith.constant 0 : i32
    %c0_i32_1 = arith.constant 0 : i32
    return %c0_i32, %c0_i32_0 : i32, i32
  }
  func.func @transform_2(%arg0: i32) -> (i32, i32) {
    %c0_i32 = arith.constant 0 : i32
    %c0_i32_0 = arith.constant 0 : i32
    %c0_i32_1 = arith.constant 0 : i32
    return %c0_i32, %c0_i32_0 : i32, i32
  }
  func.func @transform_3(%arg0: i32) -> (i32, i32) {
    %c0_i32 = arith.constant 0 : i32
    %c0_i32_0 = arith.constant 0 : i32
    %c0_i32_1 = arith.constant 0 : i32
    return %c0_i32, %c0_i32_0 : i32, i32
  }
  func.func @transform_4(%arg0: i32) -> (i32, i32) {
    %c0_i32 = arith.constant 0 : i32
    %c0_i32_0 = arith.constant 0 : i32
    %c0_i32_1 = arith.constant 0 : i32
    return %c0_i32, %c0_i32_0 : i32, i32
  }
  func.func @transform_5(%arg0: i32) -> (i32, i32) {
    %c0_i32 = arith.constant 0 : i32
    %c0_i32_0 = arith.constant 0 : i32
    return %arg0, %c0_i32 : i32, i32
  }
}

</mosaic_0001>

<llo_original>
// kernel: option_critic_forward.1
$region0: #{option_critic_forward.1}
  #allocation0 [shape = 'u32[]', space=smem, size = 0x4, offset = 0x4, fixed_abs, tag = 'smem constant byte address 0x4 - core index']
  #allocation1 [shape = 'u32[72,128]{1,0:T(1,128)}', space=vmem, size = 0x9000, scoped, tag = 'internal scratch']
  %s0 = inlined_call_operand.vmem [shape: f32[8,32], index: 0, kind: input, shape index: {}]
  %s1 = inlined_call_operand.hbm [shape: f32[32,256], index: 1, kind: input, shape index: {}]
  %s2 = inlined_call_operand.vmem [shape: f32[1,256], index: 2, kind: input, shape index: {}]
  %s3 = inlined_call_operand.hbm [shape: f32[256,128], index: 3, kind: input, shape index: {}]
  %s4 = inlined_call_operand.vmem [shape: f32[1,128], index: 4, kind: input, shape index: {}]
  %s5 = inlined_call_operand.vmem [shape: f32[8,128], index: 5, kind: output, shape index: {}]
  %s6 = sld [smem:[#allocation0]]
  $region38: #{option_critic_forward.1} parent=0
    _
  %s8 = ssub.s32 1, %s6
  %s9 = scalar_select 0, %s8, %s6
  $region1: #{option_critic_forward.1} parent=0
    #allocation2 [shape = 'u8[32768]{0}', space=vmem, size = 0x8000, scoped, tag = 'input window, operand 1, single buffered']
    #allocation3 [shape = 's32[1]{0}', space=sflag, size = 0x4, scoped, tag = 'scoped memory for option_critic_forward.1']
    #allocation4 [shape = 'u8[131072]{0}', space=vmem, size = 0x20000, scoped, tag = 'input window, operand 3, single buffered']
    #allocation5 [shape = 's32[1]{0}', space=sflag, size = 0x4, scoped, tag = 'scoped memory for option_critic_forward.1']
    %10 = vsyncpa [#allocation3], 0
    %11 = vsyncpa [#allocation5], 0
    // Predicated region
    $region2: #{option_critic_forward.1} parent=1 // pred_check
      _
    $region3: #{option_critic_forward.1} parent=1 // pred_check_branch
      %13 = sbr.rel (0) target = $region5
    $region4: #{option_critic_forward.1} parent=1 // pred_region
      _
    $region5: #{option_critic_forward.1} parent=1 // pred_fallthru
      _
    // Predicated region
    $region6: #{option_critic_forward.1} parent=1 // pred_check
      _
    $region7: #{option_critic_forward.1} parent=1 // pred_check_branch
      %15 = sbr.rel (0) target = $region9
    $region8: #{option_critic_forward.1} parent=1 // pred_region
      %17 = vsyncadd [#allocation3], 0
      %s18 = sshll.u32 %s1, 4
      %s19 = int_to_ptr.hbm [resolvable:$true] %s18
      %s20 = sshll.u32 [#allocation2], 4
      %s21 = int_to_ptr.vmem [resolvable:$true] %s20
      %26 = dma.hbm_to_vmem [thread:$0]  %s19, 1024, %s21, [#allocation3], 256, 256, 16
    $region9: #{option_critic_forward.1} parent=1 // pred_fallthru
      _
    // Predicated region
    $region10: #{option_critic_forward.1} parent=1 // pred_check
      _
    $region11: #{option_critic_forward.1} parent=1 // pred_check_branch
      %28 = sbr.rel (0) target = $region13
    $region12: #{option_critic_forward.1} parent=1 // pred_region
      _
    $region13: #{option_critic_forward.1} parent=1 // pred_fallthru
      _
    // Predicated region
    $region14: #{option_critic_forward.1} parent=1 // pred_check
      _
    $region15: #{option_critic_forward.1} parent=1 // pred_check_branch
      %30 = sbr.rel (0) target = $region17
    $region16: #{option_critic_forward.1} parent=1 // pred_region
      %32 = vsyncadd [#allocation5], 0
      %s33 = sshll.u32 %s3, 4
      %s34 = int_to_ptr.hbm [resolvable:$true] %s33
      %s35 = sshll.u32 [#allocation4], 4
      %s36 = int_to_ptr.vmem [resolvable:$true] %s35
      %41 = dma.hbm_to_vmem [thread:$0]  %s34, 4096, %s36, [#allocation5], 128, 128, 8
    $region17: #{option_critic_forward.1} parent=1 // pred_fallthru
      _
    // Predicated region
    $region18: #{option_critic_forward.1} parent=1 // pred_check
      _
    $region19: #{option_critic_forward.1} parent=1 // pred_check_branch
      %43 = sbr.rel (0) target = $region21
    $region20: #{option_critic_forward.1} parent=1 // pred_region
      _
    $region21: #{option_critic_forward.1} parent=1 // pred_fallthru
      _
    // Predicated region
    $region22: #{option_critic_forward.1} parent=1 // pred_check
      _
    $region23: #{option_critic_forward.1} parent=1 // pred_check_branch
      %45 = sbr.rel (0) target = $region25
    $region24: #{option_critic_forward.1} parent=1 // pred_region
      %47 = dma.done [#allocation3], 1024
    $region25: #{option_critic_forward.1} parent=1 // pred_fallthru
      _
    // Predicated region
    $region26: #{option_critic_forward.1} parent=1 // pred_check
      _
    $region27: #{option_critic_forward.1} parent=1 // pred_check_branch
      %49 = sbr.rel (0) target = $region29
    $region28: #{option_critic_forward.1} parent=1 // pred_region
      %51 = dma.done [#allocation5], 4096
    $region29: #{option_critic_forward.1} parent=1 // pred_fallthru
      _
    %v52 = vld [vmem:[%s0] sm:$0xff]
    %v53 = vld [vmem:[#allocation2] sm:$0xff]
    %v54 = vld [vmem:[#allocation2 + $0x8] sm:$0xff]
    %v55 = vld [vmem:[#allocation2 + $0x10] sm:$0xff]
    %v56 = vld [vmem:[#allocation2 + $0x18] sm:$0xff]
    %v57 = vld [vmem:[#allocation2 + $0x20] sm:$0xff]
    %v58 = vld [vmem:[#allocation2 + $0x28] sm:$0xff]
    %v59 = vld [vmem:[#allocation2 + $0x30] sm:$0xff]
    %v60 = vld [vmem:[#allocation2 + $0x38] sm:$0xff]
    %v61 = vld [vmem:[%s2] sm:$0x3]
    %v63 = vperm.slane %v61, 0
    %v64 = vperm.slane %v61, 1
    %vm67 = vcmask 261120
    %v69 = vsel %vm67, %v52, 0
    %71 = vmatpush.msra.mxu0 0.0
    %72 = vmatpush.msra.mxu0 0.0
    %73 = vmatpush.msra.mxu0 0.0
    %74 = vmatpush.msra.mxu0 0.0
    %75 = vmatpush.msra.mxu0 0.0
    %76 = vmatpush.msra.mxu0 0.0
    %77 = vmatpush.msra.mxu0 0.0
    %78 = vmatpush.msra.mxu0 0.0
    %79 = vmatpush.msra.mxu0 0.0
    %80 = vmatpush.msra.mxu0 0.0
    %81 = vmatpush.msra.mxu0 0.0
    %82 = vmatpush.msra.mxu0 0.0
    %83 = vmatpush.msra.mxu0 %v59
    %84 = vmatpush.msra.mxu0 %v57
    %85 = vmatpush.msra.mxu0 %v55
    %86 = vmatpush.msra.mxu0 %v53
    %87 = vmatmul.f32.gmra.mxu0 %v69
    %v88 = vpop.f32.mrf.mxu0
    %v89 = vadd.f32 %v63, %v88
    %90 = vdwg.mxu0
    %91 = vmatpush.msra.mxu0 0.0
    %92 = vmatpush.msra.mxu0 0.0
    %93 = vmatpush.msra.mxu0 0.0
    %94 = vmatpush.msra.mxu0 0.0
    %95 = vmatpush.msra.mxu0 0.0
    %96 = vmatpush.msra.mxu0 0.0
    %97 = vmatpush.msra.mxu0 0.0
    %98 = vmatpush.msra.mxu0 0.0
    %99 = vmatpush.msra.mxu0 0.0
    %100 = vmatpush.msra.mxu0 0.0
    %101 = vmatpush.msra.mxu0 0.0
    %102 = vmatpush.msra.mxu0 0.0
    %103 = vmatpush.msra.mxu0 %v60
    %104 = vmatpush.msra.mxu0 %v58
    %105 = vmatpush.msra.mxu0 %v56
    %106 = vmatpush.msra.mxu0 %v54
    %107 = vmatmul.f32.gmra.mxu0 %v69
    %v108 = vpop.f32.mrf.mxu0
    %v109 = vadd.f32 %v64, %v108
    %110 = vdwg.mxu0
    %v111 = vmax.f32 %v89, 0.0
    %v112 = vmax.f32 %v109, 0.0
    %v113 = vld [vmem:[#allocation4] sm:$0xff]
    %v114 = vld [vmem:[#allocation4 + $0x8] sm:$0xff]
    %v115 = vld [vmem:[#allocation4 + $0x10] sm:$0xff]
    %v116 = vld [vmem:[#allocation4 + $0x18] sm:$0xff]
    %v117 = vld [vmem:[#allocation4 + $0x20] sm:$0xff]
    %v118 = vld [vmem:[#allocation4 + $0x28] sm:$0xff]
    %v119 = vld [vmem:[#allocation4 + $0x30] sm:$0xff]
    %v120 = vld [vmem:[#allocation4 + $0x38] sm:$0xff]
    %v121 = vld [vmem:[#allocation4 + $0x40] sm:$0xff]
    %v122 = vld [vmem:[#allocation4 + $0x48] sm:$0xff]
    %v123 = vld [vmem:[#allocation4 + $0x50] sm:$0xff]
    %v124 = vld [vmem:[#allocation4 + $0x58] sm:$0xff]
    %v125 = vld [vmem:[#allocation4 + $0x60] sm:$0xff]
    %v126 = vld [vmem:[#allocation4 + $0x68] sm:$0xff]
    %v127 = vld [vmem:[#allocation4 + $0x70] sm:$0xff]
    %v128 = vld [vmem:[#allocation4 + $0x78] sm:$0xff]
    %v129 = vld [vmem:[#allocation4 + $0x80] sm:$0xff]
    %v130 = vld [vmem:[#allocation4 + $0x88] sm:$0xff]
    %v131 = vld [vmem:[#allocation4 + $0x90] sm:$0xff]
    %v132 = vld [vmem:[#allocation4 + $0x98] sm:$0xff]
    %v133 = vld [vmem:[#allocation4 + $0xa0] sm:$0xff]
    %v134 = vld [vmem:[#allocation4 + $0xa8] sm:$0xff]
    %v135 = vld [vmem:[#allocation4 + $0xb0] sm:$0xff]
    %v136 = vld [vmem:[#allocation4 + $0xb8] sm:$0xff]
    %v137 = vld [vmem:[#allocation4 + $0xc0] sm:$0xff]
    %v138 = vld [vmem:[#allocation4 + $0xc8] sm:$0xff]
    %v139 = vld [vmem:[#allocation4 + $0xd0] sm:$0xff]
    %v140 = vld [vmem:[#allocation4 + $0xd8] sm:$0xff]
    %v141 = vld [vmem:[#allocation4 + $0xe0] sm:$0xff]
    %v142 = vld [vmem:[#allocation4 + $0xe8] sm:$0xff]
    %v143 = vld [vmem:[#allocation4 + $0xf0] sm:$0xff]
    %v144 = vld [vmem:[#allocation4 + $0xf8] sm:$0xff]
    %v145 = vld [vmem:[%s4] sm:$0x1]
    %v147 = vperm.slane %v145, 0
    %149 = vmatpush.msra.mxu0 %v128
    %150 = vmatpush.msra.mxu0 %v127
    %151 = vmatpush.msra.mxu0 %v126
    %152 = vmatpush.msra.mxu0 %v125
    %153 = vmatpush.msra.mxu0 %v124
    %154 = vmatpush.msra.mxu0 %v123
    %155 = vmatpush.msra.mxu0 %v122
    %156 = vmatpush.msra.mxu0 %v121
    %157 = vmatpush.msra.mxu0 %v120
    %158 = vmatpush.msra.mxu0 %v119
    %159 = vmatpush.msra.mxu0 %v118
    %160 = vmatpush.msra.mxu0 %v117
    %161 = vmatpush.msra.mxu0 %v116
    %162 = vmatpush.msra.mxu0 %v115
    %163 = vmatpush.msra.mxu0 %v114
    %164 = vmatpush.msra.mxu0 %v113
    %165 = vmatmul.f32.gmra.mxu0 %v111
    %v166 = vpop.f32.mrf.mxu0
    %v167 = vadd.f32 %v147, %v166
    %168 = vdwg.mxu0
    %169 = vmatpush.msra.mxu0 %v144
    %170 = vmatpush.msra.mxu0 %v143
    %171 = vmatpush.msra.mxu0 %v142
    %172 = vmatpush.msra.mxu0 %v141
    %173 = vmatpush.msra.mxu0 %v140
    %174 = vmatpush.msra.mxu0 %v139
    %175 = vmatpush.msra.mxu0 %v138
    %176 = vmatpush.msra.mxu0 %v137
    %177 = vmatpush.msra.mxu0 %v136
    %178 = vmatpush.msra.mxu0 %v135
    %179 = vmatpush.msra.mxu0 %v134
    %180 = vmatpush.msra.mxu0 %v133
    %181 = vmatpush.msra.mxu0 %v132
    %182 = vmatpush.msra.mxu0 %v131
    %183 = vmatpush.msra.mxu0 %v130
    %184 = vmatpush.msra.mxu0 %v129
    %185 = vmatmul.f32.gmra.mxu0 %v112
    %v186 = vpop.f32.mrf.mxu0
    %v187 = vadd.f32 %v167, %v186
    %188 = vdwg.mxu0
    %v189 = vlaneseq
    %v190 = vand.u32 %v189, 127
    %vm191 = vcmp.eq.s32.totalorder %v190, 7
    %v192 = vmul.f32 %v187, 0.5
    %v193 = vsel %vm191, %v192, %v187
    %v194 = vtanh.pop %v193
    %v195 = vadd.f32 %v194, 1.0
    %v196 = vmul.f32 %v195, 0.5
    %v197 = vsel %vm191, %v196, %v194
    %198 = vst [vmem:[%s5] sm:$0xff] %v197
    // Predicated region
    $region30: #{option_critic_forward.1} parent=1 // pred_check
      _
    $region31: #{option_critic_forward.1} parent=1 // pred_check_branch
      %200 = sbr.rel (0) target = $region33
    $region32: #{option_critic_forward.1} parent=1 // pred_region
      _
    $region33: #{option_critic_forward.1} parent=1 // pred_fallthru
      _
    // Predicated region
    $region34: #{option_critic_forward.1} parent=1 // pred_check
      _
    $region35: #{option_critic_forward.1} parent=1 // pred_check_branch
      %202 = sbr.rel (0) target = $region37
    $region36: #{option_critic_forward.1} parent=1 // pred_region
      _
    $region37: #{option_critic_forward.1} parent=1 // pred_fallthru
      _
    %203 = vsyncpa [#allocation3], 1
    %204 = vsyncpa [#allocation5], 1

</llo_original>
